<compile_context>
chip_gen: v6e
topology: v6e:2x2x1
jax: 0.10.0
libtpu: 0.0.40
codegen_flags: <defaults>
</compile_context>

<pallas_src>
import jax
import jax.numpy as jnp
from jax.experimental import pallas as pl
from jax.experimental.pallas import tpu as pltpu

BN_EPS = 1e-3


def _fused_mul_conv_bn_kernel(x_ref, s_ref, w_ref, g_ref, b_ref, o_ref):
    # x_ref: (Cin, P)          pixels on lanes, input channels on sublanes
    # s_ref: (1, Cin)          per-input-channel scale (x476)
    # w_ref: (Cout_blk, Cin)   1x1-conv weight block
    # g_ref: (Cout_blk, 1)     BN gamma block
    # b_ref: (Cout_blk, 1)     BN beta block
    # o_ref: (Cout_blk, P)
    #
    # Fold the channel scale into the (small) weight block: W @ (s*x) == (W*s^T) @ x.
    # (1, Cin) broadcasts along the cheap sublane direction.
    w = w_ref[...] * s_ref[...]
    y = jnp.dot(w, x_ref[...], preferred_element_type=jnp.float32)   # 1x1 conv == MXU matmul
    # BatchNorm2d training mode: biased batch statistics over all N*H*W pixels,
    # independently per output channel (so any Cout grid split is exact).
    mean = jnp.mean(y, axis=-1, keepdims=True)
    d = y - mean
    var = jnp.mean(d * d, axis=-1, keepdims=True)        # two-pass variance: safe
    a = jax.lax.rsqrt(var + BN_EPS) * g_ref[...]          # EUP rsqrt (free slot)
    o_ref[...] = y * a + (b_ref[...] - mean * a)          # folded affine, single pass
    # TODO(synk): running_mean/running_var momentum update is module training
    # state (a side-effect), not part of the returned tensor; not materialized.


def _num_tensorcores_per_chip():
    """Conservative TC count: split the grid only where megacore sharding pays."""
    try:
        kind = (getattr(jax.devices()[0], "device_kind", "") or "").lower()
        if "v7" in kind:          # v7x: 2 TensorCores per chip
            return 2
    except Exception:
        pass
    return 1                       # v5e / v6e (and safe fallback): 1 TC


def fused_mul_conv_bn(x476, x471, conv_w, gamma, beta):
    """x476: (1, Cin, 1, 1), x471: (N, Cin, H, W), conv_w: (Cout, Cin, 1, 1)."""
    N, Cin, H, W = x471.shape
    Cout = conv_w.shape[0]
    P = N * H * W

    # (Cin, P): for N == 1 this is a pure reshape (no data movement).
    if N == 1:
        x = x471.reshape(Cin, P).astype(jnp.float32)
    else:
        x = jnp.transpose(x471, (1, 0, 2, 3)).reshape(Cin, P).astype(jnp.float32)
    s = x476.reshape(1, Cin).astype(jnp.float32)              # row layout: cheap broadcast
    w = conv_w.reshape(Cout, Cin).astype(jnp.float32)         # no .T needed
    g = gamma.reshape(Cout, 1).astype(jnp.float32)
    b = beta.reshape(Cout, 1).astype(jnp.float32)

    # Generation-aware Cout split: on 1-TC chips a single grid step is strictly
    # better (full MXU row occupancy, no per-step overhead); only split when a
    # second TensorCore can actually take the other half.
    n_tc = _num_tensorcores_per_chip()
    if n_tc >= 2 and Cout % 2 == 0 and (Cout // 2) % 8 == 0:
        cout_blk = Cout // 2
    else:
        cout_blk = Cout
    n_blk = Cout // cout_blk

    cost = pl.CostEstimate(
        flops=2 * P * Cin * Cout + 8 * P * Cout,
        transcendentals=Cout,
        bytes_accessed=4 * (Cin * P + Cin + Cout * Cin + 2 * Cout + Cout * P),
    )

    out_flat = pl.pallas_call(
        _fused_mul_conv_bn_kernel,
        out_shape=jax.ShapeDtypeStruct((Cout, P), jnp.float32),
        grid=(n_blk,),
        in_specs=[
            pl.BlockSpec((Cin, P), lambda i: (0, 0)),         # x resident across steps
            pl.BlockSpec((1, Cin), lambda i: (0, 0)),
            pl.BlockSpec((cout_blk, Cin), lambda i: (i, 0)),
            pl.BlockSpec((cout_blk, 1), lambda i: (i, 0)),
            pl.BlockSpec((cout_blk, 1), lambda i: (i, 0)),
        ],
        out_specs=pl.BlockSpec((cout_blk, P), lambda i: (i, 0)),
        compiler_params=pltpu.CompilerParams(
            dimension_semantics=("parallel",)),
        cost_estimate=cost,
    )(x, s, w, g, b)

    # (Cout, P) -> NCHW; for N == 1 this is again a pure reshape (free).
    if N == 1:
        return out_flat.reshape(1, Cout, H, W)
    return jnp.transpose(out_flat.reshape(Cout, N, H, W), (1, 0, 2, 3))


def reference(x476, x471, conv_w, gamma, beta):
    """Pure-JAX reference matching PyTorch semantics (training-mode BN)."""
    x = x476 * x471                                              # (N,Cin,H,W)
    y = jax.lax.conv_general_dilated(
        x, conv_w, window_strides=(1, 1), padding="VALID",
        dimension_numbers=("NCHW", "OIHW", "NCHW"))
    mean = jnp.mean(y, axis=(0, 2, 3), keepdims=True)
    var = jnp.mean((y - mean) ** 2, axis=(0, 2, 3), keepdims=True)
    return (y - mean) * jax.lax.rsqrt(var + BN_EPS) * \
        gamma.reshape(1, -1, 1, 1) + beta.reshape(1, -1, 1, 1)


if __name__ == "__main__":
    # Small shapes consistent with the module (module is 1344->224, 1x1 conv,
    # 14x14 spatial; scaled down here for a quick self-test).
    N, Cin, Cout, H, W = 1, 96, 32, 14, 14

    key = jax.random.PRNGKey(0)
    k1, k2, k3, k4, k5 = jax.random.split(key, 5)
    x471 = jax.random.normal(k1, (N, Cin, H, W), dtype=jnp.float32)
    x476 = jax.random.normal(k2, (N, Cin, 1, 1), dtype=jnp.float32)
    bound = (1.0 / Cin) ** 0.5
    conv_w = jax.random.uniform(k3, (Cout, Cin, 1, 1), dtype=jnp.float32,
                                minval=-bound, maxval=bound)
    gamma = 1.0 + 0.1 * jax.random.normal(k4, (Cout,), dtype=jnp.float32)
    beta = 0.1 * jax.random.normal(k5, (Cout,), dtype=jnp.float32)

    out = jax.block_until_ready(
        fused_mul_conv_bn(x476, x471, conv_w, gamma, beta))
    ref = jax.block_until_ready(
        reference(x476, x471, conv_w, gamma, beta))

    assert out.shape == (N, Cout, H, W), out.shape
    assert jnp.allclose(out, ref, atol=2e-3, rtol=2e-3), \
        float(jnp.max(jnp.abs(out - ref)))
    print("KERNEL_OK")
</pallas_src>

<mosaic_0001>
module attributes {stable_mosaic.version = 11 : i64} {
  func.func @_fused_mul_conv_bn_kernel(%arg0: i32, %arg1: memref<96x196xf32, #tpu.memory_space<vmem>>, %arg2: memref<1x96xf32, #tpu.memory_space<vmem>>, %arg3: memref<32x96xf32, #tpu.memory_space<vmem>>, %arg4: memref<32x1xf32, #tpu.memory_space<vmem>>, %arg5: memref<32x1xf32, #tpu.memory_space<vmem>>, %arg6: memref<32x196xf32, #tpu.memory_space<vmem>>) attributes {dimension_semantics = [#tpu.dimension_semantics<parallel>], iteration_bounds = array<i64: 1>, scalar_prefetch = 0 : i64, scratch_operands = 0 : i64, tpu.core_type = #tpu.core_type<tc>, window_params = [{pipeline_mode = #tpu.pipeline_mode<synchronous>, transform_indices = @transform_0, window_bounds = array<i64: 96, 196>}, {pipeline_mode = #tpu.pipeline_mode<synchronous>, transform_indices = @transform_1, window_bounds = array<i64: 1, 96>}, {transform_indices = @transform_2, window_bounds = array<i64: 32, 96>}, {transform_indices = @transform_3, window_bounds = array<i64: 32, 1>}, {transform_indices = @transform_4, window_bounds = array<i64: 32, 1>}, {transform_indices = @transform_5, window_bounds = array<i64: 32, 196>}]} {
    %c0 = arith.constant 0 : index
    %c0_0 = arith.constant 0 : index
    %0 = vector.load %arg3[%c0, %c0_0] : memref<32x96xf32, #tpu.memory_space<vmem>>, vector<32x96xf32>
    %c0_1 = arith.constant 0 : index
    %c0_2 = arith.constant 0 : index
    %1 = vector.load %arg2[%c0_1, %c0_2] : memref<1x96xf32, #tpu.memory_space<vmem>>, vector<1x96xf32>
    %2 = vector.broadcast %1 : vector<1x96xf32> to vector<32x96xf32>
    %3 = arith.mulf %0, %2 : vector<32x96xf32>
    %c0_3 = arith.constant 0 : index
    %c0_4 = arith.constant 0 : index
    %4 = vector.load %arg1[%c0_3, %c0_4] : memref<96x196xf32, #tpu.memory_space<vmem>>, vector<96x196xf32>
    %cst = arith.constant dense<0.000000e+00> : vector<32x196xf32>
    %5 = tpu.matmul %3, %4, %cst {dimension_numbers = #tpu.dot_dimension_numbers<[1], [0], [0], [1], [0, 0, 1, 1], [], []>} : vector<32x96xf32>, vector<96x196xf32>, vector<32x196xf32> -> vector<32x196xf32>
    %cst_5 = arith.constant dense<0.000000e+00> : vector<32xf32>
    %6 = vector.multi_reduction <add>, %5, %cst_5 [1] : vector<32x196xf32> to vector<32xf32>
    %7 = vector.shape_cast %6 : vector<32xf32> to vector<32x1xf32>
    %cst_6 = arith.constant 1.960000e+02 : f32
    %8 = vector.broadcast %cst_6 : f32 to vector<32x1xf32>
    %9 = arith.divf %7, %8 : vector<32x1xf32>
    %10 = vector.broadcast %9 : vector<32x1xf32> to vector<32x196xf32>
    %11 = arith.subf %5, %10 : vector<32x196xf32>
    %12 = arith.mulf %11, %11 : vector<32x196xf32>
    %cst_7 = arith.constant dense<0.000000e+00> : vector<32xf32>
    %13 = vector.multi_reduction <add>, %12, %cst_7 [1] : vector<32x196xf32> to vector<32xf32>
    %14 = vector.shape_cast %13 : vector<32xf32> to vector<32x1xf32>
    %cst_8 = arith.constant 1.960000e+02 : f32
    %15 = vector.broadcast %cst_8 : f32 to vector<32x1xf32>
    %16 = arith.divf %14, %15 : vector<32x1xf32>
    %cst_9 = arith.constant 1.000000e-03 : f32
    %17 = vector.broadcast %cst_9 : f32 to vector<32x1xf32>
    %18 = arith.addf %16, %17 : vector<32x1xf32>
    %19 = math.rsqrt %18 : vector<32x1xf32>
    %c0_10 = arith.constant 0 : index
    %c0_11 = arith.constant 0 : index
    %20 = vector.load %arg4[%c0_10, %c0_11] : memref<32x1xf32, #tpu.memory_space<vmem>>, vector<32x1xf32>
    %21 = arith.mulf %19, %20 : vector<32x1xf32>
    %22 = vector.broadcast %21 : vector<32x1xf32> to vector<32x196xf32>
    %23 = arith.mulf %5, %22 : vector<32x196xf32>
    %c0_12 = arith.constant 0 : index
    %c0_13 = arith.constant 0 : index
    %24 = vector.load %arg5[%c0_12, %c0_13] : memref<32x1xf32, #tpu.memory_space<vmem>>, vector<32x1xf32>
    %25 = arith.mulf %9, %21 : vector<32x1xf32>
    %26 = arith.subf %24, %25 : vector<32x1xf32>
    %27 = vector.broadcast %26 : vector<32x1xf32> to vector<32x196xf32>
    %28 = arith.addf %23, %27 : vector<32x196xf32>
    %c0_14 = arith.constant 0 : index
    %c0_15 = arith.constant 0 : index
    %29 = vector.load %arg6[%c0_14, %c0_15] : memref<32x196xf32, #tpu.memory_space<vmem>>, vector<32x196xf32>
    tpu.vector_store %arg6[%c0_14, %c0_15], %28 {strides = array<i32>} : memref<32x196xf32, #tpu.memory_space<vmem>>, vector<32x196xf32>,
    return
  }
  func.func @transform_0(%arg0: i32) -> (i32, i32) {
    %c0_i32 = arith.constant 0 : i32
    %c0_i32_0 = arith.constant 0 : i32
    %c0_i32_1 = arith.constant 0 : i32
    return %c0_i32, %c0_i32_0 : i32, i32
  }
  func.func @transform_1(%arg0: i32) -> (i32, i32) {
    %c0_i32 = arith.constant 0 : i32
    %c0_i32_0 = arith.constant 0 : i32
    %c0_i32_1 = arith.constant 0 : i32
    return %c0_i32, %c0_i32_0 : i32, i32
  }
  func.func @transform_2(%arg0: i32) -> (i32, i32) {
    %c0_i32 = arith.constant 0 : i32
    %c0_i32_0 = arith.constant 0 : i32
    return %arg0, %c0_i32 : i32, i32
  }
  func.func @transform_3(%arg0: i32) -> (i32, i32) {
    %c0_i32 = arith.constant 0 : i32
    %c0_i32_0 = arith.constant 0 : i32
    return %arg0, %c0_i32 : i32, i32
  }
  func.func @transform_4(%arg0: i32) -> (i32, i32) {
    %c0_i32 = arith.constant 0 : i32
    %c0_i32_0 = arith.constant 0 : i32
    return %arg0, %c0_i32 : i32, i32
  }
  func.func @transform_5(%arg0: i32) -> (i32, i32) {
    %c0_i32 = arith.constant 0 : i32
    %c0_i32_0 = arith.constant 0 : i32
    return %arg0, %c0_i32 : i32, i32
  }
}

</mosaic_0001>

<llo_original>
// kernel: tpu_custom_call.1
$region0: #{tpu_custom_call.1}
  #allocation0 [shape = 'u32[]', space=smem, size = 0x4, offset = 0x4, fixed_abs, tag = 'smem constant byte address 0x4 - core index']
  #allocation1 [shape = 'u32[144,128]{1,0:T(1,128)}', space=vmem, size = 0x12000, scoped, tag = 'internal scratch']
  %s0 = inlined_call_operand.hbm [shape: f32[96,196], index: 0, kind: input, shape index: {}]
  %s1 = inlined_call_operand.vmem [shape: f32[1,96], index: 1, kind: input, shape index: {}]
  %s2 = inlined_call_operand.vmem [shape: f32[32,96], index: 2, kind: input, shape index: {}]
  %s3 = inlined_call_operand.vmem [shape: f32[32,1], index: 3, kind: input, shape index: {}]
  %s4 = inlined_call_operand.vmem [shape: f32[32,1], index: 4, kind: input, shape index: {}]
  %s5 = inlined_call_operand.hbm [shape: f32[32,196], index: 5, kind: output, shape index: {}]
  %s6 = sld [smem:[#allocation0]]
  $region34: #{tpu_custom_call.1} parent=0
    _
  %s8 = ssub.s32 1, %s6
  %s9 = scalar_select 0, %s8, %s6
  $region1: #{tpu_custom_call.1} parent=0
    #allocation2 [shape = 'u8[98304]{0}', space=vmem, size = 0x18000, scoped, tag = 'input window, operand 0, single buffered']
    #allocation3 [shape = 's32[1]{0}', space=sflag, size = 0x4, scoped, tag = 'scoped memory for tpu_custom_call.1']
    #allocation4 [shape = 's32[1]{0}', space=sflag, size = 0x4, scoped, tag = 'scoped memory for tpu_custom_call.1']
    #allocation5 [shape = 'u8[32768]{0}', space=vmem, size = 0x8000, scoped, tag = 'output window, operand 0, single buffered']
    %10 = vsyncpa [#allocation3], 0
    %11 = vsyncpa [#allocation4], 0
    // Predicated region
    $region2: #{tpu_custom_call.1} parent=1 // pred_check
      _
    $region3: #{tpu_custom_call.1} parent=1 // pred_check_branch
      %13 = sbr.rel (0) target = $region5
    $region4: #{tpu_custom_call.1} parent=1 // pred_region
      %s15 = ssub.s32 3072, 3072
      %16 = vsyncadd [#allocation3], %s15
      %s17 = sshll.u32 [#allocation2], 4
      %s18 = int_to_ptr.vmem [resolvable:$true] %s17
      %23 = dma.hbm_to_vmem [thread:$0]  %s0, 3072, %s18, [#allocation3], 256, 256, 16
    $region5: #{tpu_custom_call.1} parent=1 // pred_fallthru
      _
    // Predicated region
    $region6: #{tpu_custom_call.1} parent=1 // pred_check
      _
    $region7: #{tpu_custom_call.1} parent=1 // pred_check_branch
      %25 = sbr.rel (0) target = $region9
    $region8: #{tpu_custom_call.1} parent=1 // pred_region
      _
    $region9: #{tpu_custom_call.1} parent=1 // pred_fallthru
      _
    // Predicated region
    $region10: #{tpu_custom_call.1} parent=1 // pred_check
      _
    $region11: #{tpu_custom_call.1} parent=1 // pred_check_branch
      %27 = sbr.rel (0) target = $region13
    $region12: #{tpu_custom_call.1} parent=1 // pred_region
      _
    $region13: #{tpu_custom_call.1} parent=1 // pred_fallthru
      _
    // Predicated region
    $region14: #{tpu_custom_call.1} parent=1 // pred_check
      _
    $region15: #{tpu_custom_call.1} parent=1 // pred_check_branch
      %29 = sbr.rel (0) target = $region17
    $region16: #{tpu_custom_call.1} parent=1 // pred_region
      _
    $region17: #{tpu_custom_call.1} parent=1 // pred_fallthru
      _
    // Predicated region
    $region18: #{tpu_custom_call.1} parent=1 // pred_check
      _
    $region19: #{tpu_custom_call.1} parent=1 // pred_check_branch
      %31 = sbr.rel (0) target = $region21
    $region20: #{tpu_custom_call.1} parent=1 // pred_region
      _
    $region21: #{tpu_custom_call.1} parent=1 // pred_fallthru
      _
    // Predicated region
    $region22: #{tpu_custom_call.1} parent=1 // pred_check
      _
    $region23: #{tpu_custom_call.1} parent=1 // pred_check_branch
      %33 = sbr.rel (0) target = $region25
    $region24: #{tpu_custom_call.1} parent=1 // pred_region
      %34 = dma.done [#allocation3], 3072
    $region25: #{tpu_custom_call.1} parent=1 // pred_fallthru
      _
    %v35 = vld [vmem:[%s2] sm:$0xff]
    %v36 = vld [vmem:[%s2 + $0x8] sm:$0xff]
    %v37 = vld [vmem:[%s2 + $0x10] sm:$0xff]
    %v38 = vld [vmem:[%s2 + $0x18] sm:$0xff]
    %v39 = vld [vmem:[%s1] sm:$0x1]
    %v41 = vlaneseq
    %v42 = vshrl.u32 %v41, 7
    %v43 = vsub.s32 0, %v42
    %v44 = vrot.slane %v39, %v43
    %v46 = vmul.f32 %v35, %v44
    %v47 = vmul.f32 %v36, %v44
    %v48 = vmul.f32 %v37, %v44
    %v49 = vmul.f32 %v38, %v44
    %v50 = vld [vmem:[#allocation2] sm:$0xff]
    %v51 = vld [vmem:[#allocation2 + $0x8] sm:$0xff]
    %v52 = vld [vmem:[#allocation2 + $0x10] sm:$0xff]
    %v53 = vld [vmem:[#allocation2 + $0x18] sm:$0xff]
    %v54 = vld [vmem:[#allocation2 + $0x20] sm:$0xff]
    %v55 = vld [vmem:[#allocation2 + $0x28] sm:$0xff]
    %v56 = vld [vmem:[#allocation2 + $0x30] sm:$0xff]
    %v57 = vld [vmem:[#allocation2 + $0x38] sm:$0xff]
    %v58 = vld [vmem:[#allocation2 + $0x40] sm:$0xff]
    %v59 = vld [vmem:[#allocation2 + $0x48] sm:$0xff]
    %v60 = vld [vmem:[#allocation2 + $0x50] sm:$0xff]
    %v61 = vld [vmem:[#allocation2 + $0x58] sm:$0xff]
    %v62 = vld [vmem:[#allocation2 + $0x60] sm:$0xff]
    %v63 = vld [vmem:[#allocation2 + $0x68] sm:$0xff]
    %v64 = vld [vmem:[#allocation2 + $0x70] sm:$0xff]
    %v65 = vld [vmem:[#allocation2 + $0x78] sm:$0xff]
    %v66 = vld [vmem:[#allocation2 + $0x80] sm:$0xff]
    %v67 = vld [vmem:[#allocation2 + $0x88] sm:$0xff]
    %v68 = vld [vmem:[#allocation2 + $0x90] sm:$0xff]
    %v69 = vld [vmem:[#allocation2 + $0x98] sm:$0xff]
    %v70 = vld [vmem:[#allocation2 + $0xa0] sm:$0xff]
    %v71 = vld [vmem:[#allocation2 + $0xa8] sm:$0xff]
    %v72 = vld [vmem:[#allocation2 + $0xb0] sm:$0xff]
    %v73 = vld [vmem:[#allocation2 + $0xb8] sm:$0xff]
    %vm74 = vcmask 785408
    %v76 = vsel %vm74, %v46, 0
    %v79 = vsel %vm74, %v47, 0
    %v82 = vsel %vm74, %v48, 0
    %v85 = vsel %vm74, %v49, 0
    %87 = vmatprep.subr.mxu0 0.0
    %88 = vmatpush1.msra.mxu0 0.0
    %89 = vmatprep.subr.mxu0 0.0
    %90 = vmatpush1.msra.mxu0 0.0
    %91 = vmatprep.subr.mxu0 0.0
    %92 = vmatpush1.msra.mxu0 0.0
    %93 = vmatprep.subr.mxu0 0.0
    %94 = vmatpush1.msra.mxu0 0.0
    %95 = vmatprep.subr.mxu0 %v73
    %96 = vmatpush1.msra.mxu0 %v72
    %97 = vmatprep.subr.mxu0 %v71
    %98 = vmatpush1.msra.mxu0 %v70
    %99 = vmatprep.subr.mxu0 %v69
    %100 = vmatpush1.msra.mxu0 %v68
    %101 = vmatprep.subr.mxu0 %v67
    %102 = vmatpush1.msra.mxu0 %v66
    %103 = vmatprep.subr.mxu0 %v65
    %104 = vmatpush1.msra.mxu0 %v64
    %105 = vmatprep.subr.mxu0 %v63
    %106 = vmatpush1.msra.mxu0 %v62
    %107 = vmatprep.subr.mxu0 %v61
    %108 = vmatpush1.msra.mxu0 %v60
    %109 = vmatprep.subr.mxu0 %v59
    %110 = vmatpush1.msra.mxu0 %v58
    %111 = vmatprep.subr.mxu0 %v57
    %112 = vmatpush1.msra.mxu0 %v56
    %113 = vmatprep.subr.mxu0 %v55
    %114 = vmatpush1.msra.mxu0 %v54
    %115 = vmatprep.subr.mxu0 %v53
    %116 = vmatpush1.msra.mxu0 %v52
    %117 = vmatprep.subr.mxu0 %v51
    %118 = vmatpush1.msra.mxu0 %v50
    %119 = vmatprep.subr.mxu0 0.0
    %120 = vmatpush2.msra.mxu0 0.0
    %121 = vmatprep.subr.mxu0 0.0
    %122 = vmatpush2.msra.mxu0 0.0
    %123 = vmatprep.subr.mxu0 0.0
    %124 = vmatpush2.msra.mxu0 0.0
    %125 = vmatprep.subr.mxu0 0.0
    %126 = vmatpush2.msra.mxu0 0.0
    %127 = vmatprep.subr.mxu0 0.0
    %128 = vmatpush2.msra.mxu0 0.0
    %129 = vmatprep.subr.mxu0 0.0
    %130 = vmatpush2.msra.mxu0 0.0
    %131 = vmatprep.subr.mxu0 0.0
    %132 = vmatpush2.msra.mxu0 0.0
    %133 = vmatprep.subr.mxu0 0.0
    %134 = vmatpush2.msra.mxu0 0.0
    %135 = vmatprep.subr.mxu0 0.0
    %136 = vmatpush2.msra.mxu0 0.0
    %137 = vmatprep.subr.mxu0 0.0
    %138 = vmatpush2.msra.mxu0 0.0
    %139 = vmatprep.subr.mxu0 0.0
    %140 = vmatpush2.msra.mxu0 0.0
    %141 = vmatprep.subr.mxu0 0.0
    %142 = vmatpush2.msra.mxu0 0.0
    %143 = vmatprep.subr.mxu0 0.0
    %144 = vmatpush2.msra.mxu0 0.0
    %145 = vmatprep.subr.mxu0 0.0
    %146 = vmatpush2.msra.mxu0 0.0
    %147 = vmatprep.subr.mxu0 0.0
    %148 = vmatpush2.msra.mxu0 0.0
    %149 = vmatprep.subr.mxu0 0.0
    %150 = vmatpush2.msra.mxu0 0.0
    %151 = vmatprep.mubr.f32.mxu0 0.0
    %152 = vmatmul.mubr.f32.gmra.mxu0 %v76
    %v153 = vpop.f32.mrf.mxu0
    %v154 = vadd.f32 0.0, %v153
    %v155 = vpop.f32.mrf.mxu0
    %v156 = vadd.f32 0.0, %v155
    %157 = vmatprep.mubr.f32.mxu0 0.0
    %158 = vmatmul.mubr.f32.gmra.mxu0 %v79
    %v159 = vpop.f32.mrf.mxu0
    %v160 = vadd.f32 0.0, %v159
    %v161 = vpop.f32.mrf.mxu0
    %v162 = vadd.f32 0.0, %v161
    %163 = vmatprep.mubr.f32.mxu0 0.0
    %164 = vmatmul.mubr.f32.gmra.mxu0 %v82
    %v165 = vpop.f32.mrf.mxu0
    %v166 = vadd.f32 0.0, %v165
    %v167 = vpop.f32.mrf.mxu0
    %v168 = vadd.f32 0.0, %v167
    %169 = vmatprep.mubr.f32.mxu0 0.0
    %170 = vmatmul.mubr.f32.gmra.mxu0 %v85
    %v171 = vpop.f32.mrf.mxu0
    %v172 = vadd.f32 0.0, %v171
    %v173 = vpop.f32.mrf.mxu0
    %v174 = vadd.f32 0.0, %v173
    %175 = vdwg.mxu0
    %vm176 = vcmask 556032
    %v177 = vsel %vm176, %v156, 0.0
    %v178 = vadd.f32 %v154, %v177
    %179 = vadd.xlane.f32.xlu0 %v178
    %v180 = vpop.xlane.xlu0 %179
    %v181 = vsel %vm176, %v162, 0.0
    %v182 = vadd.f32 %v160, %v181
    %183 = vadd.xlane.f32.xlu0 %v182
    %v184 = vpop.xlane.xlu0 %183
    %v185 = vsel %vm176, %v168, 0.0
    %v186 = vadd.f32 %v166, %v185
    %187 = vadd.xlane.f32.xlu0 %v186
    %v188 = vpop.xlane.xlu0 %187
    %v189 = vsel %vm176, %v174, 0.0
    %v190 = vadd.f32 %v172, %v189
    %191 = vadd.xlane.f32.xlu0 %v190
    %v192 = vpop.xlane.xlu0 %191
    %v193 = vrcp.pop 196.0
    %v194 = vmul.f32 %v180, %v193
    %v195 = vmul.f32 %v184, %v193
    %v196 = vmul.f32 %v188, %v193
    %v197 = vmul.f32 %v192, %v193
    %v198 = vsub.f32 %v154, %v194
    %v199 = vsub.f32 %v156, %v194
    %v200 = vsub.f32 %v160, %v195
    %v201 = vsub.f32 %v162, %v195
    %v202 = vsub.f32 %v166, %v196
    %v203 = vsub.f32 %v168, %v196
    %v204 = vsub.f32 %v172, %v197
    %v205 = vsub.f32 %v174, %v197
    %v206 = vmul.f32 %v198, %v198
    %v207 = vmul.f32 %v199, %v199
    %v208 = vmul.f32 %v200, %v200
    %v209 = vmul.f32 %v201, %v201
    %v210 = vmul.f32 %v202, %v202
    %v211 = vmul.f32 %v203, %v203
    %v212 = vmul.f32 %v204, %v204
    %v213 = vmul.f32 %v205, %v205
    %v214 = vsel %vm176, %v207, 0.0
    %v215 = vadd.f32 %v206, %v214
    %216 = vadd.xlane.f32.xlu0 %v215
    %v217 = vpop.xlane.xlu0 %216
    %v218 = vsel %vm176, %v209, 0.0
    %v219 = vadd.f32 %v208, %v218
    %220 = vadd.xlane.f32.xlu0 %v219
    %v221 = vpop.xlane.xlu0 %220
    %v222 = vsel %vm176, %v211, 0.0
    %v223 = vadd.f32 %v210, %v222
    %224 = vadd.xlane.f32.xlu0 %v223
    %v225 = vpop.xlane.xlu0 %224
    %v226 = vsel %vm176, %v213, 0.0
    %v227 = vadd.f32 %v212, %v226
    %228 = vadd.xlane.f32.xlu0 %v227
    %v229 = vpop.xlane.xlu0 %228
    %v230 = vmul.f32 %v217, %v193
    %v231 = vmul.f32 %v221, %v193
    %v232 = vmul.f32 %v225, %v193
    %v233 = vmul.f32 %v229, %v193
    %v234 = vadd.f32 %v230, 0.001
    %v235 = vadd.f32 %v231, 0.001
    %v236 = vadd.f32 %v232, 0.001
    %v237 = vadd.f32 %v233, 0.001
    %v238 = vrsqrt.pop %v234
    %v239 = vrsqrt.pop %v235
    %v240 = vrsqrt.pop %v236
    %v241 = vrsqrt.pop %v237
    %v242 = vld [vmem:[%s3] sm:$0xff]
    %v243 = vld [vmem:[%s3 + $0x8] sm:$0xff]
    %v244 = vld [vmem:[%s3 + $0x10] sm:$0xff]
    %v245 = vld [vmem:[%s3 + $0x18] sm:$0xff]
    %v246 = vmul.f32 %v238, %v242
    %v247 = vmul.f32 %v239, %v243
    %v248 = vmul.f32 %v240, %v244
    %v249 = vmul.f32 %v241, %v245
    %251 = vset.pattern.permute.xlu0 0
    %252 = vperm.xlu0 %251, %v246
    %v253 = vpop.permute.xlu0 %252
    %256 = vset.pattern.permute.xlu0 0
    %257 = vperm.xlu0 %256, %v247
    %v258 = vpop.permute.xlu0 %257
    %261 = vset.pattern.permute.xlu0 0
    %262 = vperm.xlu0 %261, %v248
    %v263 = vpop.permute.xlu0 %262
    %266 = vset.pattern.permute.xlu0 0
    %267 = vperm.xlu0 %266, %v249
    %v268 = vpop.permute.xlu0 %267
    %v270 = vmul.f32 %v154, %v253
    %v271 = vmul.f32 %v156, %v253
    %v272 = vmul.f32 %v160, %v258
    %v273 = vmul.f32 %v162, %v258
    %v274 = vmul.f32 %v166, %v263
    %v275 = vmul.f32 %v168, %v263
    %v276 = vmul.f32 %v172, %v268
    %v277 = vmul.f32 %v174, %v268
    %v278 = vld [vmem:[%s4] sm:$0xff]
    %v279 = vld [vmem:[%s4 + $0x8] sm:$0xff]
    %v280 = vld [vmem:[%s4 + $0x10] sm:$0xff]
    %v281 = vld [vmem:[%s4 + $0x18] sm:$0xff]
    %v282 = vmul.f32 %v194, %v246
    %v283 = vmul.f32 %v195, %v247
    %v284 = vmul.f32 %v196, %v248
    %v285 = vmul.f32 %v197, %v249
    %v286 = vsub.f32 %v278, %v282
    %v287 = vsub.f32 %v279, %v283
    %v288 = vsub.f32 %v280, %v284
    %v289 = vsub.f32 %v281, %v285
    %291 = vset.pattern.permute.xlu0 0
    %292 = vperm.xlu0 %291, %v286
    %v293 = vpop.permute.xlu0 %292
    %296 = vset.pattern.permute.xlu0 0
    %297 = vperm.xlu0 %296, %v287
    %v298 = vpop.permute.xlu0 %297
    %301 = vset.pattern.permute.xlu0 0
    %302 = vperm.xlu0 %301, %v288
    %v303 = vpop.permute.xlu0 %302
    %306 = vset.pattern.permute.xlu0 0
    %307 = vperm.xlu0 %306, %v289
    %v308 = vpop.permute.xlu0 %307
    %v310 = vadd.f32 %v270, %v293
    %v311 = vadd.f32 %v271, %v293
    %v312 = vadd.f32 %v272, %v298
    %v313 = vadd.f32 %v273, %v298
    %v314 = vadd.f32 %v274, %v303
    %v315 = vadd.f32 %v275, %v303
    %v316 = vadd.f32 %v276, %v308
    %v317 = vadd.f32 %v277, %v308
    %318 = vst [vmem:[#allocation5] sm:$0xff] %v310
    %319 = vst.msk [vmem:[#allocation5 + $0x8] sm:$0xff] %vm176, %v311
    %320 = vst [vmem:[#allocation5 + $0x10] sm:$0xff] %v312
    %321 = vst.msk [vmem:[#allocation5 + $0x18] sm:$0xff] %vm176, %v313
    %322 = vst [vmem:[#allocation5 + $0x20] sm:$0xff] %v314
    %323 = vst.msk [vmem:[#allocation5 + $0x28] sm:$0xff] %vm176, %v315
    %324 = vst [vmem:[#allocation5 + $0x30] sm:$0xff] %v316
    %325 = vst.msk [vmem:[#allocation5 + $0x38] sm:$0xff] %vm176, %v317
    // Predicated region
    $region26: #{tpu_custom_call.1} parent=1 // pred_check
      _
    $region27: #{tpu_custom_call.1} parent=1 // pred_check_branch
      %327 = sbr.rel (0) target = $region29
    $region28: #{tpu_custom_call.1} parent=1 // pred_region
      %s329 = ssub.s32 1024, 1024
      %330 = vsyncadd [#allocation4], %s329
      %s331 = sshll.u32 [#allocation5], 4
      %s332 = int_to_ptr.vmem [resolvable:$true] %s331
      %337 = dma.vmem_to_hbm [thread:$0]  %s332, 1024, %s5, [#allocation4], 256, 256, 16
    $region29: #{tpu_custom_call.1} parent=1 // pred_fallthru
      _
    // Predicated region
    $region30: #{tpu_custom_call.1} parent=1 // pred_check
      _
    $region31: #{tpu_custom_call.1} parent=1 // pred_check_branch
      %339 = sbr.rel (0) target = $region33
    $region32: #{tpu_custom_call.1} parent=1 // pred_region
      %340 = dma.done [#allocation4], 1024
    $region33: #{tpu_custom_call.1} parent=1 // pred_fallthru
      _
    %341 = vsyncpa [#allocation3], 1
    %342 = vsyncpa [#allocation4], 1

</llo_original>
